<compile_context>
chip_gen: v6e
topology: v6e:2x2x1
jax: 0.10.0
libtpu: 0.0.40
codegen_flags: <defaults>
</compile_context>

<pallas_src>
import jax
import jax.numpy as jnp
from jax.experimental import pallas as pl
from jax.experimental.pallas import tpu as pltpu

OUTPUT_SIZE = 180
MIN_FREQ = 62.5
MAX_FREQ = 500.0


def _init_params():
    """Deterministic parameter init mirroring the torch __init__ (unused in fwd)."""
    key = jax.random.PRNGKey(0)
    dummy_parameter = jax.random.uniform(key, (1,), dtype=jnp.float32)
    idx_pitch = jnp.exp2(
        jnp.linspace(jnp.log2(MIN_FREQ), jnp.log2(MAX_FREQ), OUTPUT_SIZE)
    ).astype(jnp.float32)
    return dummy_parameter, idx_pitch


def _one_hot_kernel(x_ref, o_ref):
    # x_ref: (1, tN) int32 block ; o_ref: (1, tN, C) block (f32 by default)
    idx = x_ref[...]  # already int32 — no second cast on the VPU
    # Single (1, 1, C) iota; broadcast inside the compare instead of
    # materializing a full (1, tN, C) int32 iota each grid step.
    classes = jax.lax.broadcasted_iota(jnp.int32, (1, 1, o_ref.shape[-1]), 2)
    o_ref[...] = (idx[:, :, None] == classes).astype(o_ref.dtype)


def _choose_flat_tile(n: int, target: int = 4096) -> int:
    """Pick a tile for the flattened row axis.

    * multiple of 128 (lane-aligned input block; also satisfies the 8-sublane
      divisibility of the output block's second-to-last dim),
    * at most `target` (4096 rows -> ~4 MiB lane-padded f32 output block,
      8 MiB double-buffered: within every generation's scoped-VMEM default),
    * small enough that the grid has >= 2 steps when n is large, so the
      "parallel" axis can be sharded across v7x's two TensorCores.
    Small n -> one full-extent block (any n is legal as a full dim).
    """
    if n <= 1024:
        return n
    half = max(128, (n // 2) // 128 * 128)
    return min(target, half)


def yaapt_decoder_forward(x, *, flat_tile=None, out_dtype=jnp.float32):
    """Equivalent of YAAPTImplementationDecoder.forward: one_hot(x.long(), 180).float()."""
    B, T = x.shape
    C = OUTPUT_SIZE
    N = B * T

    # Flatten the row axes (layout-preserving) and do the single truncating
    # cast == torch `.long()` (no float32 round-trip, no in-kernel cast).
    x_flat = x.reshape(1, N).astype(jnp.int32)

    tN = flat_tile if flat_tile is not None else _choose_flat_tile(N)
    grid = (pl.cdiv(N, tN),)

    out_flat = pl.pallas_call(
        _one_hot_kernel,
        out_shape=jax.ShapeDtypeStruct((1, N, C), out_dtype),
        grid_spec=pltpu.PrefetchScalarGridSpec(
            num_scalar_prefetch=0,
            grid=grid,
            in_specs=[pl.BlockSpec((1, tN), lambda i: (0, i))],
            out_specs=pl.BlockSpec((1, tN, C), lambda i: (0, i, 0)),
        ),
        compiler_params=pltpu.CompilerParams(
            dimension_semantics=("parallel",),
        ),
    )(x_flat)

    # Free, layout-preserving reshape back to the module's output shape.
    return out_flat.reshape(B, T, C)


if __name__ == "__main__":
    dummy_parameter, idx_pitch = _init_params()

    key = jax.random.PRNGKey(0)
    k1, k2 = jax.random.split(key)

    # Small deterministic example input: (batch=2, seq=16) indices in [0, 180).
    x_int = jax.random.randint(k1, (2, 16), 0, OUTPUT_SIZE)
    x = x_int.astype(jnp.float32)  # forward accepts non-long tensors; .long() casts

    out = jax.block_until_ready(yaapt_decoder_forward(x))
    ref = jax.nn.one_hot(x_int, OUTPUT_SIZE, dtype=jnp.float32)
    assert out.shape == (2, 16, OUTPUT_SIZE)
    assert out.dtype == jnp.float32
    assert bool(jnp.all(out == ref))

    # Multi-step grid with a ragged last block (N=1300 -> tile 640, 3 steps),
    # exercising the int-input path (cast is a no-op).
    x2 = jax.random.randint(k2, (1, 1300), 0, OUTPUT_SIZE)
    ref2 = jax.nn.one_hot(x2, OUTPUT_SIZE, dtype=jnp.float32)
    out2 = jax.block_until_ready(yaapt_decoder_forward(x2))
    assert out2.shape == (1, 1300, OUTPUT_SIZE)
    assert bool(jnp.all(out2 == ref2))

    # Explicit (small) tile: 6 grid steps, ragged 20-row tail.
    out3 = jax.block_until_ready(yaapt_decoder_forward(x2, flat_tile=256))
    assert bool(jnp.all(out3 == ref2))

    print("KERNEL_OK")
</pallas_src>

<mosaic_0001>
module attributes {stable_mosaic.version = 11 : i64} {
  func.func @_one_hot_kernel(%arg0: i32, %arg1: memref<1x32xi32, #tpu.memory_space<vmem>>, %arg2: memref<1x32x180xf32, #tpu.memory_space<vmem>>) attributes {dimension_semantics = [#tpu.dimension_semantics<parallel>], iteration_bounds = array<i64: 1>, scalar_prefetch = 0 : i64, scratch_operands = 0 : i64, tpu.core_type = #tpu.core_type<tc>, window_params = [{transform_indices = @transform_0, window_bounds = array<i64: 1, 32>}, {transform_indices = @transform_1, window_bounds = array<i64: 1, 32, 180>}]} {
    %c0 = arith.constant 0 : index
    %c0_0 = arith.constant 0 : index
    %0 = vector.load %arg1[%c0, %c0_0] : memref<1x32xi32, #tpu.memory_space<vmem>>, vector<1x32xi32>
    %1 = tpu.iota {dimensions = array<i32: 2>} : vector<1x1x180xi32>
    %2 = vector.shape_cast %0 : vector<1x32xi32> to vector<1x32x1xi32>
    %3 = vector.broadcast %2 : vector<1x32x1xi32> to vector<1x32x180xi32>
    %4 = vector.broadcast %1 : vector<1x1x180xi32> to vector<1x32x180xi32>
    %5 = arith.cmpi eq, %3, %4 : vector<1x32x180xi32>
    %6 = arith.extui %5 : vector<1x32x180xi1> to vector<1x32x180xi32>
    %7 = arith.sitofp %6 : vector<1x32x180xi32> to vector<1x32x180xf32>
    %c0_1 = arith.constant 0 : index
    %c0_2 = arith.constant 0 : index
    %c0_3 = arith.constant 0 : index
    %8 = vector.load %arg2[%c0_1, %c0_2, %c0_3] : memref<1x32x180xf32, #tpu.memory_space<vmem>>, vector<1x32x180xf32>
    tpu.vector_store %arg2[%c0_1, %c0_2, %c0_3], %7 {strides = array<i32>} : memref<1x32x180xf32, #tpu.memory_space<vmem>>, vector<1x32x180xf32>,
    return
  }
  func.func @transform_0(%arg0: i32) -> (i32, i32) {
    %c0_i32 = arith.constant 0 : i32
    %c0_i32_0 = arith.constant 0 : i32
    return %c0_i32, %arg0 : i32, i32
  }
  func.func @transform_1(%arg0: i32) -> (i32, i32, i32) {
    %c0_i32 = arith.constant 0 : i32
    %c0_i32_0 = arith.constant 0 : i32
    %c0_i32_1 = arith.constant 0 : i32
    return %c0_i32, %arg0, %c0_i32_0 : i32, i32, i32
  }
}

</mosaic_0001>

<llo_original>
// kernel: tpu_custom_call.1
$region0: #{tpu_custom_call.1}
  #allocation0 [shape = 'u32[]', space=smem, size = 0x4, offset = 0x4, fixed_abs, tag = 'smem constant byte address 0x4 - core index']
  #allocation1 [shape = 'u32[144,128]{1,0:T(1,128)}', space=vmem, size = 0x12000, scoped, tag = 'internal scratch']
  %s0 = inlined_call_operand.hbm [shape: s32[1,32], index: 0, kind: input, shape index: {}]
  %s1 = inlined_call_operand.hbm [shape: f32[1,32,180], index: 1, kind: output, shape index: {}]
  %s2 = sld [smem:[#allocation0]]
  $region18: #{tpu_custom_call.1} parent=0
    _
  %s4 = ssub.s32 1, %s2
  %s5 = scalar_select 0, %s4, %s2
  $region1: #{tpu_custom_call.1} parent=0
    #allocation2 [shape = 'u8[512]{0}', space=vmem, size = 0x400, scoped, tag = 'input window, operand 0, single buffered']
    #allocation3 [shape = 's32[1]{0}', space=sflag, size = 0x4, scoped, tag = 'scoped memory for tpu_custom_call.1']
    #allocation4 [shape = 's32[1]{0}', space=sflag, size = 0x4, scoped, tag = 'scoped memory for tpu_custom_call.1']
    #allocation5 [shape = 'u8[32768]{0}', space=vmem, size = 0x8000, scoped, tag = 'output window, operand 0, single buffered']
    %6 = vsyncpa [#allocation3], 0
    %7 = vsyncpa [#allocation4], 0
    // Predicated region
    $region2: #{tpu_custom_call.1} parent=1 // pred_check
      _
    $region3: #{tpu_custom_call.1} parent=1 // pred_check_branch
      %9 = sbr.rel (0) target = $region5
    $region4: #{tpu_custom_call.1} parent=1 // pred_region
      %s11 = ssub.s32 16, 16
      %12 = vsyncadd [#allocation3], %s11
      %s14 = sshll.u32 [#allocation2], 4
      %s15 = int_to_ptr.vmem [resolvable:$true] %s14
      %17 = dma.hbm_to_vmem [thread:$0]  %s0, 16, %s15, [#allocation3]
    $region5: #{tpu_custom_call.1} parent=1 // pred_fallthru
      _
    // Predicated region
    $region6: #{tpu_custom_call.1} parent=1 // pred_check
      _
    $region7: #{tpu_custom_call.1} parent=1 // pred_check_branch
      %19 = sbr.rel (0) target = $region9
    $region8: #{tpu_custom_call.1} parent=1 // pred_region
      %20 = dma.done [#allocation3], 16
    $region9: #{tpu_custom_call.1} parent=1 // pred_fallthru
      _
    %v21 = vld [vmem:[#allocation2] sm:$0x1]
    %v22 = vlaneseq
    %v23 = vand.u32 %v22, 127
    %v24 = vadd.s32 %v23, 128
    %v25 = vlaneseq
    %v26 = vshrl.u32 %v25, 7
    %v27 = vsub.s32 0, %v26
    %v28 = vrot.slane %v21, %v27
    %30 = vbcast.lane.b32.xlu0 %v28, 256
    %v31 = vpop.permute.xlu0 %30
    %s33 = sor.u32 256, 8
    %34 = vbcast.lane.b32.xlu0 %v28, %s33
    %v35 = vpop.permute.xlu0 %34
    %s37 = sor.u32 256, 16
    %38 = vbcast.lane.b32.xlu0 %v28, %s37
    %v39 = vpop.permute.xlu0 %38
    %s41 = sor.u32 256, 24
    %42 = vbcast.lane.b32.xlu0 %v28, %s41
    %v43 = vpop.permute.xlu0 %42
    %vm44 = vcmp.eq.s32.totalorder %v31, %v23
    %vm45 = vcmp.eq.s32.totalorder %v31, %v24
    %vm46 = vcmp.eq.s32.totalorder %v35, %v23
    %vm47 = vcmp.eq.s32.totalorder %v35, %v24
    %vm48 = vcmp.eq.s32.totalorder %v39, %v23
    %vm49 = vcmp.eq.s32.totalorder %v39, %v24
    %vm50 = vcmp.eq.s32.totalorder %v43, %v23
    %vm51 = vcmp.eq.s32.totalorder %v43, %v24
    %v52 = vsel %vm44, 1, 0
    %v53 = vsel %vm45, 1, 0
    %v54 = vsel %vm46, 1, 0
    %v55 = vsel %vm47, 1, 0
    %v56 = vsel %vm48, 1, 0
    %v57 = vsel %vm49, 1, 0
    %v58 = vsel %vm50, 1, 0
    %v59 = vsel %vm51, 1, 0
    %v60 = vcvt.s32.f32 %v52
    %v61 = vcvt.s32.f32 %v53
    %v62 = vcvt.s32.f32 %v54
    %v63 = vcvt.s32.f32 %v55
    %v64 = vcvt.s32.f32 %v56
    %v65 = vcvt.s32.f32 %v57
    %v66 = vcvt.s32.f32 %v58
    %v67 = vcvt.s32.f32 %v59
    %68 = vst [vmem:[#allocation5] sm:$0xff] %v60
    %vm69 = vcmask 424960
    %70 = vst.msk [vmem:[#allocation5 + $0x8] sm:$0xff] %vm69, %v61
    %71 = vst [vmem:[#allocation5 + $0x10] sm:$0xff] %v62
    %72 = vst.msk [vmem:[#allocation5 + $0x18] sm:$0xff] %vm69, %v63
    %73 = vst [vmem:[#allocation5 + $0x20] sm:$0xff] %v64
    %74 = vst.msk [vmem:[#allocation5 + $0x28] sm:$0xff] %vm69, %v65
    %75 = vst [vmem:[#allocation5 + $0x30] sm:$0xff] %v66
    %76 = vst.msk [vmem:[#allocation5 + $0x38] sm:$0xff] %vm69, %v67
    // Predicated region
    $region10: #{tpu_custom_call.1} parent=1 // pred_check
      _
    $region11: #{tpu_custom_call.1} parent=1 // pred_check_branch
      %78 = sbr.rel (0) target = $region13
    $region12: #{tpu_custom_call.1} parent=1 // pred_region
      %s80 = ssub.s32 1024, 1024
      %81 = vsyncadd [#allocation4], %s80
      %s82 = sshll.u32 [#allocation5], 4
      %s83 = int_to_ptr.vmem [resolvable:$true] %s82
      %88 = dma.vmem_to_hbm [thread:$0]  %s83, 1024, %s1, [#allocation4], 256, 256, 16
    $region13: #{tpu_custom_call.1} parent=1 // pred_fallthru
      _
    // Predicated region
    $region14: #{tpu_custom_call.1} parent=1 // pred_check
      _
    $region15: #{tpu_custom_call.1} parent=1 // pred_check_branch
      %90 = sbr.rel (0) target = $region17
    $region16: #{tpu_custom_call.1} parent=1 // pred_region
      %91 = dma.done [#allocation4], 1024
    $region17: #{tpu_custom_call.1} parent=1 // pred_fallthru
      _
    %92 = vsyncpa [#allocation3], 1
    %93 = vsyncpa [#allocation4], 1

</llo_original>
